<compile_context>
chip_gen: v7x
topology: tpu7x:2x2x1
jax: 0.10.0
libtpu: 0.0.40
codegen_flags: <defaults>
</compile_context>

<pallas_src>
import functools
from math import sqrt

import jax
import jax.numpy as jnp
from jax import lax
from jax.experimental import pallas as pl
from jax.experimental.pallas import tpu as pltpu


def _round_up(x: int, m: int) -> int:
    return ((x + m - 1) // m) * m


def _ceil_div(a: int, b: int) -> int:
    return -(-a // b)


def _seq_att_kernel(q_ref, k_ref, v_ref, w_ref, o_ref, *, num_heads, hidden_dim):
    """One (R, D) row tile.  Projections + logit-sum + weight-expansion on the MXU."""
    H, hd = num_heads, hidden_dim
    D = H * hd
    Hp = _round_up(H, 8)                       # pad head axis of tiny matrices to 8
    inv_scale = 1.0 / sqrt(hd)
    f32 = jnp.float32

    # Lane roll helper: pltpu.roll (single XLU vrot) on native 128-multiple lane widths,
    # jnp.roll (static slice + concat, always lowers) otherwise.  Correctness only needs
    # the k-pass and v-pass to use the *same* roll for a given offset — which they do.
    use_vrot = (D % 128 == 0)

    def roll_lanes(x, shift):
        if shift == 0:
            return x
        if use_vrot:
            return pltpu.roll(x, shift=shift, axis=1)
        return jnp.roll(x, shift, axis=1)

    # --- projections: one full-row-block MXU matmul per weight (f32 accumulate).
    q = jnp.dot(q_ref[...], w_ref[0], preferred_element_type=f32)   # (R, D)
    k = jnp.dot(k_ref[...], w_ref[1], preferred_element_type=f32)   # (R, D)
    v = jnp.dot(v_ref[...], w_ref[2], preferred_element_type=f32)   # (R, D)

    # Constant matrices (iota + compare; no integer division so lowering stays trivial):
    #   block_sum (D, Hp): column g sums the hd lanes of head block g and folds in the
    #                      1/sqrt(hd) scaling  -> head-pair logits come off the MXU.
    #   expand    (Hp, D): row g repeats a per-head scalar across its hd lanes.
    lane_id = lax.broadcasted_iota(jnp.int32, (D, Hp), 0)
    head_lo = lax.broadcasted_iota(jnp.int32, (D, Hp), 1) * hd
    block_sum = jnp.where((lane_id >= head_lo) & (lane_id < head_lo + hd),
                          inv_scale, 0.0).astype(f32)               # (D, Hp)
    lane_id_t = lax.broadcasted_iota(jnp.int32, (Hp, D), 1)
    head_lo_t = lax.broadcasted_iota(jnp.int32, (Hp, D), 0) * hd
    expand = jnp.where((lane_id_t >= head_lo_t) & (lane_id_t < head_lo_t + hd),
                       1.0, 0.0).astype(f32)                        # (Hp, D)

    # --- pass 1: logits for every head pair, one cyclic head offset per iteration.
    # logits_d[:, h] = <q_h, k_{(h+d) mod H}> / sqrt(hd).  Softmax over the offset axis
    # equals softmax over the head axis (per-h it is just a permutation of the g's).
    logits = []
    for delta in range(H):
        shift = (-delta * hd) % D
        prod = q * roll_lanes(k, shift)                              # VPU
        logits.append(jnp.dot(prod, block_sum,
                              preferred_element_type=f32))          # (R, Hp), MXU

    m = logits[0]
    for t in logits[1:]:
        m = jnp.maximum(m, t)
    exps = [jnp.exp(t - m) for t in logits]                          # EUP
    denom = exps[0]
    for t in exps[1:]:
        denom = denom + t
    r = pl.reciprocal(denom, approx=True)                            # EUP slot
    r = r * (2.0 - denom * r)                                        # Newton -> ~f32-exact

    # --- pass 2: out = sum_d softmax_d * v_{(h+d) mod H}.  The (R, Hp) weight slab is
    # expanded to (R, D) on the MXU and FMA'd against the identically-rolled v.
    acc = jnp.zeros(q.shape, f32)
    for delta in range(H):
        shift = (-delta * hd) % D
        w_exp = jnp.dot(exps[delta] * r, expand,
                        preferred_element_type=f32)                  # (R, D), MXU
        acc = acc + w_exp * roll_lanes(v, shift)                     # VPU FMA

    # Lane-dense store of the whole (R, D) slab (unpermuted (B, S, H, hd) layout).
    o_ref[...] = acc.astype(o_ref.dtype)


@functools.partial(jax.jit, static_argnames=("num_heads",))
def seq_att(query, key, value, wq, wk, wv, num_heads):
    """Pallas SeqAtt.forward.  wq/wk/wv are (D, D) nn.Linear weights (out, in)."""
    B, S, D = query.shape
    assert D % num_heads == 0, "input_dim must be divisible by num_heads"
    H = num_heads
    hd = D // H
    dtype = query.dtype
    itemsize = jnp.dtype(dtype).itemsize

    rows = B * S
    # Row tile: large enough to fill the MXU / amortize per-step overhead, small enough
    # that double-buffered in/out row blocks stay within a ~16 MiB budget.
    budget = 16 * 1024 * 1024
    r = budget // (8 * D * max(1, itemsize))        # (3 in + 1 out) blocks x 2 buffers
    r = max(8, min(512, (r // 8) * 8))
    r = min(r, _round_up(rows, 8))
    # Keep the total grid >= 2 when possible so both v7x TensorCores get work (only
    # triggers for problems that would otherwise fit in a single tile).
    if _ceil_div(rows, r) < 2 and rows >= 16:
        r = max(8, _round_up(_ceil_div(rows, 2), 8))
    rows_pad = _round_up(rows, r)

    q2 = query.reshape(rows, D)
    k2 = key.reshape(rows, D)
    v2 = value.reshape(rows, D)
    if rows_pad != rows:
        pad = ((0, rows_pad - rows), (0, 0))
        q2 = jnp.pad(q2, pad)
        k2 = jnp.pad(k2, pad)
        v2 = jnp.pad(v2, pad)

    # nn.Linear computes x @ W.T; pre-transpose once and stack so the kernel fetches a
    # single resident (3, D, D) weight block and runs plain x @ w matmuls.
    w_stack = jnp.stack([wq.T, wk.T, wv.T]).astype(dtype)

    kernel = functools.partial(_seq_att_kernel, num_heads=H, hidden_dim=hd)

    # Explicit VMEM budget (v7x: 64 MiB physical, 32 MiB scoped default).
    est = (4 * r * D * itemsize * 2          # in/out row blocks, double-buffered
           + 3 * D * D * itemsize * 2        # resident weight stack (2 pipeline buffers)
           + 8 * r * D * 4                   # f32 kernel temporaries (q, k, v, acc, rolls)
           + 2 * H * r * _round_up(H, 8) * 4 # per-offset logit / exp slabs
           + 2 * D * _round_up(H, 8) * 4)    # block-sum / expand constants
    vmem_limit = int(min(100 * 1024 * 1024, max(32 * 1024 * 1024, int(est * 1.5))))
    # NOTE: for very large D the resident (3, D, D) weight dominates VMEM; tiling the
    # weights over a reduction grid axis (and single-buffering them, since their block
    # index never changes) would be the next VMEM lever.

    out_flat = pl.pallas_call(
        kernel,
        out_shape=jax.ShapeDtypeStruct((rows_pad, D), dtype),
        grid=(rows_pad // r,),
        in_specs=[pl.BlockSpec((r, D), lambda i: (i, 0)),
                  pl.BlockSpec((r, D), lambda i: (i, 0)),
                  pl.BlockSpec((r, D), lambda i: (i, 0)),
                  pl.BlockSpec((3, D, D), lambda i: (0, 0, 0))],
        out_specs=pl.BlockSpec((r, D), lambda i: (i, 0)),
        compiler_params=pltpu.CompilerParams(
            dimension_semantics=("parallel",),
            vmem_limit_bytes=vmem_limit),
    )(q2, k2, v2, w_stack)

    out = out_flat[:rows].reshape(B, S, H, hd)
    # permute(0, 2, 1, 3).contiguous().view(B, S, D): a cheap streaming transpose in
    # XLA; fusing it into the kernel would force sub-128-lane masked stores (hd minor).
    return out.transpose(0, 2, 1, 3).reshape(B, S, D)


def _reference(query, key, value, wq, wk, wv, num_heads):
    """Pure-JAX transcription of the PyTorch forward for verification."""
    B, S, D = query.shape
    hd = D // num_heads
    q = (query @ wq.T).reshape(B, S, num_heads, hd)
    k = (key @ wk.T).reshape(B, S, num_heads, hd)
    v = (value @ wv.T).reshape(B, S, num_heads, hd)
    att = jnp.einsum('bshd,bsgd->bshg', q, k) / sqrt(hd)
    att = jax.nn.softmax(att, axis=-1)
    out = jnp.einsum('bshg,bsgd->bshd', att, v)
    return out.transpose(0, 2, 1, 3).reshape(B, S, D)


if __name__ == "__main__":
    B, S, D, H = 2, 8, 32, 4   # input_dim=32, num_heads=4 -> hidden_dim=8

    root = jax.random.PRNGKey(0)
    kq, kk, kv, kwq, kwk, kwv = jax.random.split(root, 6)

    query = jax.random.normal(kq, (B, S, D), dtype=jnp.float32)
    key = jax.random.normal(kk, (B, S, D), dtype=jnp.float32)
    value = jax.random.normal(kv, (B, S, D), dtype=jnp.float32)

    # Deterministic nn.Linear-style init: uniform(-1/sqrt(D), 1/sqrt(D)), shape (out, in).
    bound = 1.0 / sqrt(D)
    wq = jax.random.uniform(kwq, (D, D), jnp.float32, -bound, bound)
    wk = jax.random.uniform(kwk, (D, D), jnp.float32, -bound, bound)
    wv = jax.random.uniform(kwv, (D, D), jnp.float32, -bound, bound)

    out = seq_att(query, key, value, wq, wk, wv, H)
    out = jax.block_until_ready(out)

    ref = _reference(query, key, value, wq, wk, wv, H)
    assert out.shape == (B, S, D)
    assert jnp.allclose(out, ref, atol=1e-4, rtol=1e-4), "mismatch vs reference"

    print("KERNEL_OK")
</pallas_src>

<mosaic_0001>
module attributes {stable_mosaic.version = 11 : i64} {
  func.func @_seq_att_kernel(%arg0: i32, %arg1: memref<8x32xf32, #tpu.memory_space<vmem>>, %arg2: memref<8x32xf32, #tpu.memory_space<vmem>>, %arg3: memref<8x32xf32, #tpu.memory_space<vmem>>, %arg4: memref<3x32x32xf32, #tpu.memory_space<vmem>>, %arg5: memref<8x32xf32, #tpu.memory_space<vmem>>) attributes {dimension_semantics = [#tpu.dimension_semantics<parallel>], iteration_bounds = array<i64: 2>, scalar_prefetch = 0 : i64, scratch_operands = 0 : i64, tpu.core_type = #tpu.core_type<tc>, window_params = [{transform_indices = @transform_0, window_bounds = array<i64: 8, 32>}, {transform_indices = @transform_1, window_bounds = array<i64: 8, 32>}, {transform_indices = @transform_2, window_bounds = array<i64: 8, 32>}, {pipeline_mode = #tpu.pipeline_mode<synchronous>, transform_indices = @transform_3, window_bounds = array<i64: 3, 32, 32>}, {transform_indices = @transform_4, window_bounds = array<i64: 8, 32>}]} {
    %c0 = arith.constant 0 : index
    %c0_0 = arith.constant 0 : index
    %0 = vector.load %arg1[%c0, %c0_0] : memref<8x32xf32, #tpu.memory_space<vmem>>, vector<8x32xf32>
    %c0_1 = arith.constant 0 : index
    %c0_2 = arith.constant 0 : index
    %c0_3 = arith.constant 0 : index
    %1 = vector.load %arg4[%c0_1, %c0_2, %c0_3] : memref<3x32x32xf32, #tpu.memory_space<vmem>>, vector<1x32x32xf32>
    %2 = vector.shape_cast %1 : vector<1x32x32xf32> to vector<32x32xf32>
    %cst = arith.constant dense<0.000000e+00> : vector<8x32xf32>
    %3 = tpu.matmul %0, %2, %cst {dimension_numbers = #tpu.dot_dimension_numbers<[1], [0], [0], [1], [0, 0, 1, 1], [], []>} : vector<8x32xf32>, vector<32x32xf32>, vector<8x32xf32> -> vector<8x32xf32>
    %c0_4 = arith.constant 0 : index
    %c0_5 = arith.constant 0 : index
    %4 = vector.load %arg2[%c0_4, %c0_5] : memref<8x32xf32, #tpu.memory_space<vmem>>, vector<8x32xf32>
    %c1 = arith.constant 1 : index
    %c0_6 = arith.constant 0 : index
    %c0_7 = arith.constant 0 : index
    %5 = vector.load %arg4[%c1, %c0_6, %c0_7] : memref<3x32x32xf32, #tpu.memory_space<vmem>>, vector<1x32x32xf32>
    %6 = vector.shape_cast %5 : vector<1x32x32xf32> to vector<32x32xf32>
    %cst_8 = arith.constant dense<0.000000e+00> : vector<8x32xf32>
    %7 = tpu.matmul %4, %6, %cst_8 {dimension_numbers = #tpu.dot_dimension_numbers<[1], [0], [0], [1], [0, 0, 1, 1], [], []>} : vector<8x32xf32>, vector<32x32xf32>, vector<8x32xf32> -> vector<8x32xf32>
    %c0_9 = arith.constant 0 : index
    %c0_10 = arith.constant 0 : index
    %8 = vector.load %arg3[%c0_9, %c0_10] : memref<8x32xf32, #tpu.memory_space<vmem>>, vector<8x32xf32>
    %c2 = arith.constant 2 : index
    %c0_11 = arith.constant 0 : index
    %c0_12 = arith.constant 0 : index
    %9 = vector.load %arg4[%c2, %c0_11, %c0_12] : memref<3x32x32xf32, #tpu.memory_space<vmem>>, vector<1x32x32xf32>
    %10 = vector.shape_cast %9 : vector<1x32x32xf32> to vector<32x32xf32>
    %cst_13 = arith.constant dense<0.000000e+00> : vector<8x32xf32>
    %11 = tpu.matmul %8, %10, %cst_13 {dimension_numbers = #tpu.dot_dimension_numbers<[1], [0], [0], [1], [0, 0, 1, 1], [], []>} : vector<8x32xf32>, vector<32x32xf32>, vector<8x32xf32> -> vector<8x32xf32>
    %12 = tpu.iota {dimensions = array<i32: 0>} : vector<32x8xi32>
    %13 = tpu.iota {dimensions = array<i32: 1>} : vector<32x8xi32>
    %c8_i32 = arith.constant 8 : i32
    %14 = vector.broadcast %c8_i32 : i32 to vector<32x8xi32>
    %15 = arith.muli %13, %14 : vector<32x8xi32>
    %16 = arith.cmpi sge, %12, %15 : vector<32x8xi32>
    %c8_i32_14 = arith.constant 8 : i32
    %17 = vector.broadcast %c8_i32_14 : i32 to vector<32x8xi32>
    %18 = arith.addi %15, %17 : vector<32x8xi32>
    %19 = arith.cmpi slt, %12, %18 : vector<32x8xi32>
    %20 = arith.andi %16, %19 : vector<32x8xi1>
    %cst_15 = arith.constant 0.353553385 : f32
    %cst_16 = arith.constant 0.000000e+00 : f32
    %21 = vector.broadcast %cst_15 : f32 to vector<32x8xf32>
    %22 = vector.broadcast %cst_16 : f32 to vector<32x8xf32>
    %23 = arith.select %20, %21, %22 : vector<32x8xi1>, vector<32x8xf32>
    %24 = tpu.iota {dimensions = array<i32: 1>} : vector<8x32xi32>
    %25 = tpu.iota {dimensions = array<i32: 0>} : vector<8x32xi32>
    %c8_i32_17 = arith.constant 8 : i32
    %26 = vector.broadcast %c8_i32_17 : i32 to vector<8x32xi32>
    %27 = arith.muli %25, %26 : vector<8x32xi32>
    %28 = arith.cmpi sge, %24, %27 : vector<8x32xi32>
    %c8_i32_18 = arith.constant 8 : i32
    %29 = vector.broadcast %c8_i32_18 : i32 to vector<8x32xi32>
    %30 = arith.addi %27, %29 : vector<8x32xi32>
    %31 = arith.cmpi slt, %24, %30 : vector<8x32xi32>
    %32 = arith.andi %28, %31 : vector<8x32xi1>
    %cst_19 = arith.constant 1.000000e+00 : f32
    %cst_20 = arith.constant 0.000000e+00 : f32
    %33 = vector.broadcast %cst_19 : f32 to vector<8x32xf32>
    %34 = vector.broadcast %cst_20 : f32 to vector<8x32xf32>
    %35 = arith.select %32, %33, %34 : vector<8x32xi1>, vector<8x32xf32>
    %36 = arith.mulf %3, %7 : vector<8x32xf32>
    %cst_21 = arith.constant dense<0.000000e+00> : vector<8x8xf32>
    %37 = tpu.matmul %36, %23, %cst_21 {dimension_numbers = #tpu.dot_dimension_numbers<[1], [0], [0], [1], [0, 0, 1, 1], [], []>} : vector<8x32xf32>, vector<32x8xf32>, vector<8x8xf32> -> vector<8x8xf32>
    %38 = vector.extract_strided_slice %7 {offsets = [0, 8], sizes = [8, 24], strides = [1, 1]} : vector<8x32xf32> to vector<8x24xf32>
    %39 = vector.extract_strided_slice %7 {offsets = [0, 0], sizes = [8, 8], strides = [1, 1]} : vector<8x32xf32> to vector<8x8xf32>
    %40 = tpu.concatenate %38, %39 in 1 : vector<8x24xf32>, vector<8x8xf32> -> vector<8x32xf32>
    %41 = arith.mulf %3, %40 : vector<8x32xf32>
    %cst_22 = arith.constant dense<0.000000e+00> : vector<8x8xf32>
    %42 = tpu.matmul %41, %23, %cst_22 {dimension_numbers = #tpu.dot_dimension_numbers<[1], [0], [0], [1], [0, 0, 1, 1], [], []>} : vector<8x32xf32>, vector<32x8xf32>, vector<8x8xf32> -> vector<8x8xf32>
    %43 = vector.extract_strided_slice %7 {offsets = [0, 16], sizes = [8, 16], strides = [1, 1]} : vector<8x32xf32> to vector<8x16xf32>
    %44 = vector.extract_strided_slice %7 {offsets = [0, 0], sizes = [8, 16], strides = [1, 1]} : vector<8x32xf32> to vector<8x16xf32>
    %45 = tpu.concatenate %43, %44 in 1 : vector<8x16xf32>, vector<8x16xf32> -> vector<8x32xf32>
    %46 = arith.mulf %3, %45 : vector<8x32xf32>
    %cst_23 = arith.constant dense<0.000000e+00> : vector<8x8xf32>
    %47 = tpu.matmul %46, %23, %cst_23 {dimension_numbers = #tpu.dot_dimension_numbers<[1], [0], [0], [1], [0, 0, 1, 1], [], []>} : vector<8x32xf32>, vector<32x8xf32>, vector<8x8xf32> -> vector<8x8xf32>
    %48 = vector.extract_strided_slice %7 {offsets = [0, 24], sizes = [8, 8], strides = [1, 1]} : vector<8x32xf32> to vector<8x8xf32>
    %49 = vector.extract_strided_slice %7 {offsets = [0, 0], sizes = [8, 24], strides = [1, 1]} : vector<8x32xf32> to vector<8x24xf32>
    %50 = tpu.concatenate %48, %49 in 1 : vector<8x8xf32>, vector<8x24xf32> -> vector<8x32xf32>
    %51 = arith.mulf %3, %50 : vector<8x32xf32>
    %cst_24 = arith.constant dense<0.000000e+00> : vector<8x8xf32>
    %52 = tpu.matmul %51, %23, %cst_24 {dimension_numbers = #tpu.dot_dimension_numbers<[1], [0], [0], [1], [0, 0, 1, 1], [], []>} : vector<8x32xf32>, vector<32x8xf32>, vector<8x8xf32> -> vector<8x8xf32>
    %53 = arith.maximumf %37, %42 : vector<8x8xf32>
    %54 = arith.maximumf %53, %47 : vector<8x8xf32>
    %55 = arith.maximumf %54, %52 : vector<8x8xf32>
    %56 = arith.subf %37, %55 : vector<8x8xf32>
    %57 = math.exp %56 : vector<8x8xf32>
    %58 = arith.subf %42, %55 : vector<8x8xf32>
    %59 = math.exp %58 : vector<8x8xf32>
    %60 = arith.subf %47, %55 : vector<8x8xf32>
    %61 = math.exp %60 : vector<8x8xf32>
    %62 = arith.subf %52, %55 : vector<8x8xf32>
    %63 = math.exp %62 : vector<8x8xf32>
    %64 = arith.addf %57, %59 : vector<8x8xf32>
    %65 = arith.addf %64, %61 : vector<8x8xf32>
    %66 = arith.addf %65, %63 : vector<8x8xf32>
    %67 = tpu.reciprocal %66 {approx = true} : vector<8x8xf32> -> vector<8x8xf32>
    %68 = arith.mulf %66, %67 : vector<8x8xf32>
    %cst_25 = arith.constant 2.000000e+00 : f32
    %69 = vector.broadcast %cst_25 : f32 to vector<8x8xf32>
    %70 = arith.subf %69, %68 : vector<8x8xf32>
    %71 = arith.mulf %67, %70 : vector<8x8xf32>
    %cst_26 = arith.constant 0.000000e+00 : f32
    %72 = vector.broadcast %cst_26 : f32 to vector<8x32xf32>
    %73 = arith.mulf %57, %71 : vector<8x8xf32>
    %cst_27 = arith.constant dense<0.000000e+00> : vector<8x32xf32>
    %74 = tpu.matmul %73, %35, %cst_27 {dimension_numbers = #tpu.dot_dimension_numbers<[1], [0], [0], [1], [0, 0, 1, 1], [], []>} : vector<8x8xf32>, vector<8x32xf32>, vector<8x32xf32> -> vector<8x32xf32>
    %75 = arith.mulf %74, %11 : vector<8x32xf32>
    %76 = arith.addf %72, %75 : vector<8x32xf32>
    %77 = arith.mulf %59, %71 : vector<8x8xf32>
    %cst_28 = arith.constant dense<0.000000e+00> : vector<8x32xf32>
    %78 = tpu.matmul %77, %35, %cst_28 {dimension_numbers = #tpu.dot_dimension_numbers<[1], [0], [0], [1], [0, 0, 1, 1], [], []>} : vector<8x8xf32>, vector<8x32xf32>, vector<8x32xf32> -> vector<8x32xf32>
    %79 = vector.extract_strided_slice %11 {offsets = [0, 8], sizes = [8, 24], strides = [1, 1]} : vector<8x32xf32> to vector<8x24xf32>
    %80 = vector.extract_strided_slice %11 {offsets = [0, 0], sizes = [8, 8], strides = [1, 1]} : vector<8x32xf32> to vector<8x8xf32>
    %81 = tpu.concatenate %79, %80 in 1 : vector<8x24xf32>, vector<8x8xf32> -> vector<8x32xf32>
    %82 = arith.mulf %78, %81 : vector<8x32xf32>
    %83 = arith.addf %76, %82 : vector<8x32xf32>
    %84 = arith.mulf %61, %71 : vector<8x8xf32>
    %cst_29 = arith.constant dense<0.000000e+00> : vector<8x32xf32>
    %85 = tpu.matmul %84, %35, %cst_29 {dimension_numbers = #tpu.dot_dimension_numbers<[1], [0], [0], [1], [0, 0, 1, 1], [], []>} : vector<8x8xf32>, vector<8x32xf32>, vector<8x32xf32> -> vector<8x32xf32>
    %86 = vector.extract_strided_slice %11 {offsets = [0, 16], sizes = [8, 16], strides = [1, 1]} : vector<8x32xf32> to vector<8x16xf32>
    %87 = vector.extract_strided_slice %11 {offsets = [0, 0], sizes = [8, 16], strides = [1, 1]} : vector<8x32xf32> to vector<8x16xf32>
    %88 = tpu.concatenate %86, %87 in 1 : vector<8x16xf32>, vector<8x16xf32> -> vector<8x32xf32>
    %89 = arith.mulf %85, %88 : vector<8x32xf32>
    %90 = arith.addf %83, %89 : vector<8x32xf32>
    %91 = arith.mulf %63, %71 : vector<8x8xf32>
    %cst_30 = arith.constant dense<0.000000e+00> : vector<8x32xf32>
    %92 = tpu.matmul %91, %35, %cst_30 {dimension_numbers = #tpu.dot_dimension_numbers<[1], [0], [0], [1], [0, 0, 1, 1], [], []>} : vector<8x8xf32>, vector<8x32xf32>, vector<8x32xf32> -> vector<8x32xf32>
    %93 = vector.extract_strided_slice %11 {offsets = [0, 24], sizes = [8, 8], strides = [1, 1]} : vector<8x32xf32> to vector<8x8xf32>
    %94 = vector.extract_strided_slice %11 {offsets = [0, 0], sizes = [8, 24], strides = [1, 1]} : vector<8x32xf32> to vector<8x24xf32>
    %95 = tpu.concatenate %93, %94 in 1 : vector<8x8xf32>, vector<8x24xf32> -> vector<8x32xf32>
    %96 = arith.mulf %92, %95 : vector<8x32xf32>
    %97 = arith.addf %90, %96 : vector<8x32xf32>
    %c0_31 = arith.constant 0 : index
    %c0_32 = arith.constant 0 : index
    %98 = vector.load %arg5[%c0_31, %c0_32] : memref<8x32xf32, #tpu.memory_space<vmem>>, vector<8x32xf32>
    tpu.vector_store %arg5[%c0_31, %c0_32], %97 {strides = array<i32>} : memref<8x32xf32, #tpu.memory_space<vmem>>, vector<8x32xf32>,
    return
  }
  func.func @transform_0(%arg0: i32) -> (i32, i32) {
    %c0_i32 = arith.constant 0 : i32
    %c0_i32_0 = arith.constant 0 : i32
    return %arg0, %c0_i32 : i32, i32
  }
  func.func @transform_1(%arg0: i32) -> (i32, i32) {
    %c0_i32 = arith.constant 0 : i32
    %c0_i32_0 = arith.constant 0 : i32
    return %arg0, %c0_i32 : i32, i32
  }
  func.func @transform_2(%arg0: i32) -> (i32, i32) {
    %c0_i32 = arith.constant 0 : i32
    %c0_i32_0 = arith.constant 0 : i32
    return %arg0, %c0_i32 : i32, i32
  }
  func.func @transform_3(%arg0: i32) -> (i32, i32, i32) {
    %c0_i32 = arith.constant 0 : i32
    %c0_i32_0 = arith.constant 0 : i32
    %c0_i32_1 = arith.constant 0 : i32
    %c0_i32_2 = arith.constant 0 : i32
    return %c0_i32, %c0_i32_0, %c0_i32_1 : i32, i32, i32
  }
  func.func @transform_4(%arg0: i32) -> (i32, i32) {
    %c0_i32 = arith.constant 0 : i32
    %c0_i32_0 = arith.constant 0 : i32
    return %arg0, %c0_i32 : i32, i32
  }
}

</mosaic_0001>

<llo_original>
// kernel: seq_att.1
$region0: #{seq_att.1}
  #allocation0 [shape = 'u32[]', space=smem, size = 0x4, offset = 0x4, fixed_abs, tag = 'smem constant byte address 0x4 - core index']
  #allocation1 [shape = 'u32[144,128]{1,0:T(1,128)}', space=vmem, size = 0x12000, scoped, tag = 'internal scratch']
  %s0 = inlined_call_operand.vmem [shape: f32[16,32], index: 0, kind: input, shape index: {}]
  %s1 = inlined_call_operand.vmem [shape: f32[16,32], index: 1, kind: input, shape index: {}]
  %s2 = inlined_call_operand.vmem [shape: f32[16,32], index: 2, kind: input, shape index: {}]
  %s3 = inlined_call_operand.vmem [shape: f32[3,32,32], index: 3, kind: input, shape index: {}]
  %s4 = inlined_call_operand.vmem [shape: f32[16,32], index: 4, kind: output, shape index: {}]
  %s5 = sld [smem:[#allocation0]]
  $region49: #{seq_att.1} parent=0
    _
  %s7 = ssub.s32 1, %s5
  %s8 = scalar_select 0, %s7, %s5
  loop: start=0, step=1, limit=4
  $region2: #{seq_att.1} parent=0 // loop_pre_header
    _
  $region3: #{seq_att.1} parent=0 // loop_header
    %s10 = sphi 0, %s14
    %p11 = scmp.ge.s32.totalorder %s10, 4
    %s20 = sphi 0, %s22
    %s23 = sphi 0, %s20
    %s24 = sphi 0, %s23
    %s40 = sphi 0, %s24
    %s46 = sphi 0, %s48
    %s49 = sphi 0, %s46
    %s50 = sphi 0, %s49
    %s66 = sphi 0, %s50
    %s72 = sphi 0, %s74
    %s75 = sphi 0, %s72
    %s76 = sphi 0, %s75
    %s92 = sphi 0, %s76
    %s96 = sphi 0, %s96
    %s98 = sphi 0, %s96
    %s99 = sphi 0, %s98
    %s113 = sphi 0, %s99
    %s119 = sphi 0, %s121
    %s122 = sphi 0, %s119
    %s123 = sphi 0, %s122
    %s139 = sphi 0, %s123
  $region4: #{seq_att.1} parent=0 // loop_header_branch
    %13 = sbr.rel (%p11) target = $region8
  $region5: #{seq_att.1} parent=0 // loop_body
    %s15 = ssub.s32 %s10, 1
    %s16 = ssub.s32 %s10, 2
    %s17 = sadd.s32 %s10, 1
    %s18 = ssub.s32 %s10, %s17
    %p19 = scmp.eq.s32.totalorder %s18, 0
    %s21 = sadd.s32 %s20, 1
    %s22 = scalar_select %p19, %s20, %s21
    %p25 = pneg %p19
    %p26 = scmp.eq.s32.totalorder %s10, 1
    %p27 = por %p25, %p26
    %p28 = scmp.ne.s32.totalorder %s20, %s23
    %p29 = scmp.eq.s32.totalorder %s10, 0
    %p30 = por %p28, %p29
    %p31 = scmp.ne.s32.totalorder %s20, %s23
    %p32 = scmp.eq.s32.totalorder %s15, 1
    %p33 = por %p31, %p32
    %p34 = scmp.ne.s32.totalorder %s23, %s24
    %p35 = scmp.eq.s32.totalorder %s15, 0
    %p36 = por %p34, %p35
    %p37 = scmp.ne.s32.totalorder %s23, %s24
    %p38 = scmp.eq.s32.totalorder %s16, 1
    %p39 = por %p37, %p38
    %p41 = scmp.ne.s32.totalorder %s24, %s40
    %p42 = scmp.eq.s32.totalorder %s16, 0
    %p43 = por %p41, %p42
    %s44 = ssub.s32 %s10, %s17
    %p45 = scmp.eq.s32.totalorder %s44, 0
    %s47 = sadd.s32 %s46, 1
    %s48 = scalar_select %p45, %s46, %s47
    %p51 = pneg %p45
    %p52 = scmp.eq.s32.totalorder %s10, 1
    %p53 = por %p51, %p52
    %p54 = scmp.ne.s32.totalorder %s46, %s49
    %p55 = scmp.eq.s32.totalorder %s10, 0
    %p56 = por %p54, %p55
    %p57 = scmp.ne.s32.totalorder %s46, %s49
    %p58 = scmp.eq.s32.totalorder %s15, 1
    %p59 = por %p57, %p58
    %p60 = scmp.ne.s32.totalorder %s49, %s50
    %p61 = scmp.eq.s32.totalorder %s15, 0
    %p62 = por %p60, %p61
    %p63 = scmp.ne.s32.totalorder %s49, %s50
    %p64 = scmp.eq.s32.totalorder %s16, 1
    %p65 = por %p63, %p64
    %p67 = scmp.ne.s32.totalorder %s50, %s66
    %p68 = scmp.eq.s32.totalorder %s16, 0
    %p69 = por %p67, %p68
    %s70 = ssub.s32 %s10, %s17
    %p71 = scmp.eq.s32.totalorder %s70, 0
    %s73 = sadd.s32 %s72, 1
    %s74 = scalar_select %p71, %s72, %s73
    %p77 = pneg %p71
    %p78 = scmp.eq.s32.totalorder %s10, 1
    %p79 = por %p77, %p78
    %p80 = scmp.ne.s32.totalorder %s72, %s75
    %p81 = scmp.eq.s32.totalorder %s10, 0
    %p82 = por %p80, %p81
    %p83 = scmp.ne.s32.totalorder %s72, %s75
    %p84 = scmp.eq.s32.totalorder %s15, 1
    %p85 = por %p83, %p84
    %p86 = scmp.ne.s32.totalorder %s75, %s76
    %p87 = scmp.eq.s32.totalorder %s15, 0
    %p88 = por %p86, %p87
    %p89 = scmp.ne.s32.totalorder %s75, %s76
    %p90 = scmp.eq.s32.totalorder %s16, 1
    %p91 = por %p89, %p90
    %p93 = scmp.ne.s32.totalorder %s76, %s92
    %p94 = scmp.eq.s32.totalorder %s16, 0
    %p95 = por %p93, %p94
    %s97 = sadd.s32 %s96, 1
    %p100 = scmp.eq.s32.totalorder %s10, 1
    %p101 = scmp.ne.s32.totalorder %s96, %s98
    %p102 = scmp.eq.s32.totalorder %s10, 0
    %p103 = por %p101, %p102
    %p104 = scmp.ne.s32.totalorder %s96, %s98
    %p105 = scmp.eq.s32.totalorder %s15, 1
    %p106 = por %p104, %p105
    %p107 = scmp.ne.s32.totalorder %s98, %s99
    %p108 = scmp.eq.s32.totalorder %s15, 0
    %p109 = por %p107, %p108
    %p110 = scmp.ne.s32.totalorder %s98, %s99
    %p111 = scmp.eq.s32.totalorder %s16, 1
    %p112 = por %p110, %p111
    %p114 = scmp.ne.s32.totalorder %s99, %s113
    %p115 = scmp.eq.s32.totalorder %s16, 0
    %p116 = por %p114, %p115
    %s117 = ssub.s32 %s10, %s17
    %p118 = scmp.eq.s32.totalorder %s117, 0
    %s120 = sadd.s32 %s119, 1
    %s121 = scalar_select %p118, %s119, %s120
    %p124 = pneg %p118
    %p125 = scmp.eq.s32.totalorder %s10, 1
    %p126 = por %p124, %p125
    %p127 = scmp.ne.s32.totalorder %s119, %s122
    %p128 = scmp.eq.s32.totalorder %s10, 0
    %p129 = por %p127, %p128
    %p130 = scmp.ne.s32.totalorder %s119, %s122
    %p131 = scmp.eq.s32.totalorder %s15, 1
    %p132 = por %p130, %p131
    %p133 = scmp.ne.s32.totalorder %s122, %s123
    %p134 = scmp.eq.s32.totalorder %s15, 0
    %p135 = por %p133, %p134
    %p136 = scmp.ne.s32.totalorder %s122, %s123
    %p137 = scmp.eq.s32.totalorder %s16, 1
    %p138 = por %p136, %p137
    %p140 = scmp.ne.s32.totalorder %s123, %s139
    %p141 = scmp.eq.s32.totalorder %s16, 0
    %p142 = por %p140, %p141
    %p143 = scmp.le.s32.totalorder 1, %s10
    %p144 = scmp.lt.s32.totalorder %s10, 3
    %p145 = pnand %p143, %p144
    %p146 = pneg %p145
    // Predicated region
    $region9: #{seq_att.1} parent=5 // pred_check
      _
    $region10: #{seq_att.1} parent=5 // pred_check_branch
      %148 = sbr.rel (%p145) target = $region12
    $region11: #{seq_att.1} parent=5 // pred_region
      %s149 = ssub.s32 %s10, 1
      // Predicated region
      $region13: #{seq_att.1} parent=11 // pred_check
        %p150 = pneg %p109
      $region14: #{seq_att.1} parent=11 // pred_check_branch
        %152 = sbr.rel (%p150) target = $region16
      $region15: #{seq_att.1} parent=11 // pred_region
        _
      $region16: #{seq_att.1} parent=11 // pred_fallthru
        _
    $region12: #{seq_att.1} parent=5 // pred_fallthru
      _
    %p153 = scmp.lt.s32.totalorder %s10, 2
    // Predicated region
    $region17: #{seq_att.1} parent=5 // pred_check
      %p154 = pneg %p153
    $region18: #{seq_att.1} parent=5 // pred_check_branch
      %156 = sbr.rel (%p154) target = $region20
    $region19: #{seq_att.1} parent=5 // pred_region
      // Predicated region
      $region21: #{seq_att.1} parent=19 // pred_check
        %p157 = pneg %p30
      $region22: #{seq_att.1} parent=19 // pred_check_branch
        %159 = sbr.rel (%p157) target = $region24
      $region23: #{seq_att.1} parent=19 // pred_region
        %p160 = scmp.lt.s32.totalorder %s10, 1
        %s161 = scalar_select %p160, %s10, 1
        %s162 = smul.addr %s161, 8
        %s163 = scalar_lea.vmem %s0, %s162
      $region24: #{seq_att.1} parent=19 // pred_fallthru
        _
      // Predicated region
      $region25: #{seq_att.1} parent=19 // pred_check
        %p164 = pneg %p56
      $region26: #{seq_att.1} parent=19 // pred_check_branch
        %166 = sbr.rel (%p164) target = $region28
      $region27: #{seq_att.1} parent=19 // pred_region
        %p167 = scmp.lt.s32.totalorder %s10, 1
        %s168 = scalar_select %p167, %s10, 1
        %s169 = smul.addr %s168, 8
        %s170 = scalar_lea.vmem %s1, %s169
      $region28: #{seq_att.1} parent=19 // pred_fallthru
        _
      // Predicated region
      $region29: #{seq_att.1} parent=19 // pred_check
        %p171 = pneg %p82
      $region30: #{seq_att.1} parent=19 // pred_check_branch
        %173 = sbr.rel (%p171) target = $region32
      $region31: #{seq_att.1} parent=19 // pred_region
        %p174 = scmp.lt.s32.totalorder %s10, 1
        %s175 = scalar_select %p174, %s10, 1
        %s176 = smul.addr %s175, 8
        %s177 = scalar_lea.vmem %s2, %s176
      $region32: #{seq_att.1} parent=19 // pred_fallthru
        _
    $region20: #{seq_att.1} parent=5 // pred_fallthru
      _
    %p178 = scmp.le.s32.totalorder 1, %s10
    %p179 = scmp.lt.s32.totalorder %s10, 3
    %p180 = pnand %p178, %p179
    %p181 = pneg %p180
    // Predicated region
    $region33: #{seq_att.1} parent=5 // pred_check
      _
    $region34: #{seq_att.1} parent=5 // pred_check_branch
      %183 = sbr.rel (%p180) target = $region36
    $region35: #{seq_att.1} parent=5 // pred_region
      %s184 = ssub.s32 %s10, 1
      %p185 = scmp.lt.s32.totalorder %s15, 1
      %s186 = scalar_select %p185, %s15, 1
      %s187 = smul.addr %s186, 8
      %s188 = scalar_lea.vmem %s0, %s187
      %p189 = pneg %p36
      %p190 = pneg %p33
      %p191 = scmp.lt.s32.totalorder %s15, 1
      %s192 = scalar_select %p191, %s15, 1
      %s193 = smul.addr %s192, 8
      %s194 = scalar_lea.vmem %s1, %s193
      %p195 = pneg %p62
      %p196 = pneg %p59
      %p197 = scmp.lt.s32.totalorder %s15, 1
      %s198 = scalar_select %p197, %s15, 1
      %s199 = smul.addr %s198, 8
      %s200 = scalar_lea.vmem %s2, %s199
      %p201 = pneg %p88
      %p202 = pneg %p85
      %p203 = pneg %p109
      %p204 = pneg %p106
      %p205 = pneg %p135
      %p206 = pneg %p132
      %p207 = scmp.lt.s32.totalorder %s15, 1
      %s208 = scalar_select %p207, %s15, 1
      %s209 = smul.addr %s208, 8
      %s210 = scalar_lea.vmem %s4, %s209
      %p211 = scmp.lt.s32.totalorder %s15, 1
      %s212 = scalar_select %p211, %s15, 1
      %s213 = smul.addr %s212, 8
      %s214 = scalar_lea.vmem %s0, %s213
      %p215 = scmp.lt.s32.totalorder %s15, 1
      %s216 = scalar_select %p215, %s15, 1
      %s217 = smul.addr %s216, 8
      %s218 = scalar_lea.vmem %s1, %s217
      %p219 = scmp.lt.s32.totalorder %s15, 1
      %s220 = scalar_select %p219, %s15, 1
      %s221 = smul.addr %s220, 8
      %s222 = scalar_lea.vmem %s2, %s221
      %p223 = scmp.lt.s32.totalorder %s15, 1
      %s224 = scalar_select %p223, %s15, 1
      %s225 = smul.addr %s224, 8
      %s226 = scalar_lea.vmem %s4, %s225
      %v227 = vld [vmem:[%s214] sm:$0xff]
      %v228 = vld [vmem:[%s3] sm:$0xff]
      %v229 = vld [vmem:[%s3 + $0x8] sm:$0xff]
      %v230 = vld [vmem:[%s3 + $0x10] sm:$0xff]
      %v231 = vld [vmem:[%s3 + $0x18] sm:$0xff]
      %vm232 = vcmask 261120
      %v234 = vsel %vm232, %v227, 0
      %236 = vmatprep.subr.mxu0 0.0
      %237 = vmatpush1.msra.mxu0 %v228
      %238 = vmatprep.subr.mxu0 0.0
      %239 = vmatpush1.msra.mxu0 %v229
      %240 = vmatprep.subr.mxu0 0.0
      %241 = vmatpush1.msra.mxu0 %v230
      %242 = vmatprep.subr.mxu0 0.0
      %243 = vmatpush1.msra.mxu0 %v231
      %244 = vmatprep.subr.mxu0 0.0
      %245 = vmatpush1.msra.mxu0 0.0
      %246 = vmatprep.subr.mxu0 0.0
      %247 = vmatpush1.msra.mxu0 0.0
      %248 = vmatprep.subr.mxu0 0.0
      %249 = vmatpush1.msra.mxu0 0.0
      %250 = vmatprep.subr.mxu0 0.0
      %251 = vmatpush1.msra.mxu0 0.0
      %252 = vmatprep.subr.mxu0 0.0
      %253 = vmatpush1.msra.mxu0 0.0
      %254 = vmatprep.subr.mxu0 0.0
      %255 = vmatpush1.msra.mxu0 0.0
      %256 = vmatprep.subr.mxu0 0.0
      %257 = vmatpush1.msra.mxu0 0.0
      %258 = vmatprep.subr.mxu0 0.0
      %259 = vmatpush1.msra.mxu0 0.0
      %260 = vmatprep.subr.mxu0 0.0
      %261 = vmatpush1.msra.mxu0 0.0
      %262 = vmatprep.subr.mxu0 0.0
      %263 = vmatpush1.msra.mxu0 0.0
      %264 = vmatprep.subr.mxu0 0.0
      %265 = vmatpush1.msra.mxu0 0.0
      %266 = vmatprep.subr.mxu0 0.0
      %267 = vmatpush1.msra.mxu0 0.0
      %268 = vmatprep.subr.mxu0 0.0
      %269 = vmatpush1.msra.mxu0 0.0
      %270 = vmatprep.subr.mxu0 0.0
      %271 = vmatpush1.msra.mxu0 0.0
      %272 = vmatprep.subr.mxu0 0.0
      %273 = vmatpush1.msra.mxu0 0.0
      %274 = vmatprep.subr.mxu0 0.0
      %275 = vmatpush1.msra.mxu0 0.0
      %276 = vmatprep.subr.mxu0 0.0
      %277 = vmatpush1.msra.mxu0 0.0
      %278 = vmatprep.subr.mxu0 0.0
      %279 = vmatpush1.msra.mxu0 0.0
      %280 = vmatprep.subr.mxu0 0.0
      %281 = vmatpush1.msra.mxu0 0.0
      %282 = vmatprep.subr.mxu0 0.0
      %283 = vmatpush1.msra.mxu0 0.0
      %284 = vmatprep.subr.mxu0 0.0
      %285 = vmatpush1.msra.mxu0 0.0
      %286 = vmatprep.subr.mxu0 0.0
      %287 = vmatpush1.msra.mxu0 0.0
      %288 = vmatprep.subr.mxu0 0.0
      %289 = vmatpush1.msra.mxu0 0.0
      %290 = vmatprep.subr.mxu0 0.0
      %291 = vmatpush1.msra.mxu0 0.0
      %292 = vmatprep.subr.mxu0 0.0
      %293 = vmatpush1.msra.mxu0 0.0
      %294 = vmatprep.subr.mxu0 0.0
      %295 = vmatpush1.msra.mxu0 0.0
      %296 = vmatprep.subr.mxu0 0.0
      %297 = vmatpush1.msra.mxu0 0.0
      %298 = vmatprep.subr.mxu0 0.0
      %299 = vmatpush1.msra.mxu0 0.0
      %300 = vmatprep.mubr.f32.mxu0 0.0
      %301 = vmatmul.mubr.f32.gmra.mrb[0].mxu0 %v234
      %v302 = vpop.f32.mrb[0].mxu0
      %v303 = vadd.f32 0.0, %v302
      %v304 = vpop.f32.mrb[0].mxu0
      %305 = vdwg.mxu0
      %v306 = vld [vmem:[%s218] sm:$0xff]
      %s307 = scalar_lea.vmem %s3, 32
      %v308 = vld [vmem:[%s307] sm:$0xff]
      %v309 = vld [vmem:[%s307 + $0x8] sm:$0xff]
      %v310 = vld [vmem:[%s307 + $0x10] sm:$0xff]
      %v311 = vld [vmem:[%s307 + $0x18] sm:$0xff]
      %v313 = vsel %vm232, %v306, 0
      %315 = vmatprep.subr.mxu0 0.0
      %316 = vmatpush1.msra.mxu0 %v308
      %317 = vmatprep.subr.mxu0 0.0
      %318 = vmatpush1.msra.mxu0 %v309
      %319 = vmatprep.subr.mxu0 0.0
      %320 = vmatpush1.msra.mxu0 %v310
      %321 = vmatprep.subr.mxu0 0.0
      %322 = vmatpush1.msra.mxu0 %v311
      %323 = vmatprep.subr.mxu0 0.0
      %324 = vmatpush1.msra.mxu0 0.0
      %325 = vmatprep.subr.mxu0 0.0
      %326 = vmatpush1.msra.mxu0 0.0
      %327 = vmatprep.subr.mxu0 0.0
      %328 = vmatpush1.msra.mxu0 0.0
      %329 = vmatprep.subr.mxu0 0.0
      %330 = vmatpush1.msra.mxu0 0.0
      %331 = vmatprep.subr.mxu0 0.0
      %332 = vmatpush1.msra.mxu0 0.0
      %333 = vmatprep.subr.mxu0 0.0
      %334 = vmatpush1.msra.mxu0 0.0
      %335 = vmatprep.subr.mxu0 0.0
      %336 = vmatpush1.msra.mxu0 0.0
      %337 = vmatprep.subr.mxu0 0.0
      %338 = vmatpush1.msra.mxu0 0.0
      %339 = vmatprep.subr.mxu0 0.0
      %340 = vmatpush1.msra.mxu0 0.0
      %341 = vmatprep.subr.mxu0 0.0
      %342 = vmatpush1.msra.mxu0 0.0
      %343 = vmatprep.subr.mxu0 0.0
      %344 = vmatpush1.msra.mxu0 0.0
      %345 = vmatprep.subr.mxu0 0.0
      %346 = vmatpush1.msra.mxu0 0.0
      %347 = vmatprep.subr.mxu0 0.0
      %348 = vmatpush1.msra.mxu0 0.0
      %349 = vmatprep.subr.mxu0 0.0
      %350 = vmatpush1.msra.mxu0 0.0
      %351 = vmatprep.subr.mxu0 0.0
      %352 = vmatpush1.msra.mxu0 0.0
      %353 = vmatprep.subr.mxu0 0.0
      %354 = vmatpush1.msra.mxu0 0.0
      %355 = vmatprep.subr.mxu0 0.0
      %356 = vmatpush1.msra.mxu0 0.0
      %357 = vmatprep.subr.mxu0 0.0
      %358 = vmatpush1.msra.mxu0 0.0
      %359 = vmatprep.subr.mxu0 0.0
      %360 = vmatpush1.msra.mxu0 0.0
      %361 = vmatprep.subr.mxu0 0.0
      %362 = vmatpush1.msra.mxu0 0.0
      %363 = vmatprep.subr.mxu0 0.0
      %364 = vmatpush1.msra.mxu0 0.0
      %365 = vmatprep.subr.mxu0 0.0
      %366 = vmatpush1.msra.mxu0 0.0
      %367 = vmatprep.subr.mxu0 0.0
      %368 = vmatpush1.msra.mxu0 0.0
      %369 = vmatprep.subr.mxu0 0.0
      %370 = vmatpush1.msra.mxu0 0.0
      %371 = vmatprep.subr.mxu0 0.0
      %372 = vmatpush1.msra.mxu0 0.0
      %373 = vmatprep.subr.mxu0 0.0
      %374 = vmatpush1.msra.mxu0 0.0
      %375 = vmatprep.subr.mxu0 0.0
      %376 = vmatpush1.msra.mxu0 0.0
      %377 = vmatprep.subr.mxu0 0.0
      %378 = vmatpush1.msra.mxu0 0.0
      %379 = vmatprep.mubr.f32.mxu0 0.0
      %380 = vmatmul.mubr.f32.gmra.mrb[0].mxu0 %v313
      %v381 = vpop.f32.mrb[0].mxu0
      %v382 = vadd.f32 0.0, %v381
      %v383 = vpop.f32.mrb[0].mxu0
      %384 = vdwg.mxu0
      %v385 = vld [vmem:[%s222] sm:$0xff]
      %s386 = scalar_lea.vmem %s3, 64
      %v387 = vld [vmem:[%s386] sm:$0xff]
      %v388 = vld [vmem:[%s386 + $0x8] sm:$0xff]
      %v389 = vld [vmem:[%s386 + $0x10] sm:$0xff]
      %v390 = vld [vmem:[%s386 + $0x18] sm:$0xff]
      %v392 = vsel %vm232, %v385, 0
      %394 = vmatprep.subr.mxu0 0.0
      %395 = vmatpush1.msra.mxu0 %v387
      %396 = vmatprep.subr.mxu0 0.0
      %397 = vmatpush1.msra.mxu0 %v388
      %398 = vmatprep.subr.mxu0 0.0
      %399 = vmatpush1.msra.mxu0 %v389
      %400 = vmatprep.subr.mxu0 0.0
      %401 = vmatpush1.msra.mxu0 %v390
      %402 = vmatprep.subr.mxu0 0.0
      %403 = vmatpush1.msra.mxu0 0.0
      %404 = vmatprep.subr.mxu0 0.0
      %405 = vmatpush1.msra.mxu0 0.0
      %406 = vmatprep.subr.mxu0 0.0
      %407 = vmatpush1.msra.mxu0 0.0
      %408 = vmatprep.subr.mxu0 0.0
      %409 = vmatpush1.msra.mxu0 0.0
      %410 = vmatprep.subr.mxu0 0.0
      %411 = vmatpush1.msra.mxu0 0.0
      %412 = vmatprep.subr.mxu0 0.0
      %413 = vmatpush1.msra.mxu0 0.0
      %414 = vmatprep.subr.mxu0 0.0
      %415 = vmatpush1.msra.mxu0 0.0
      %416 = vmatprep.subr.mxu0 0.0
      %417 = vmatpush1.msra.mxu0 0.0
      %418 = vmatprep.subr.mxu0 0.0
      %419 = vmatpush1.msra.mxu0 0.0
      %420 = vmatprep.subr.mxu0 0.0
      %421 = vmatpush1.msra.mxu0 0.0
      %422 = vmatprep.subr.mxu0 0.0
      %423 = vmatpush1.msra.mxu0 0.0
      %424 = vmatprep.subr.mxu0 0.0
      %425 = vmatpush1.msra.mxu0 0.0
      %426 = vmatprep.subr.mxu0 0.0
      %427 = vmatpush1.msra.mxu0 0.0
      %428 = vmatprep.subr.mxu0 0.0
      %429 = vmatpush1.msra.mxu0 0.0
      %430 = vmatprep.subr.mxu0 0.0
      %431 = vmatpush1.msra.mxu0 0.0
      %432 = vmatprep.subr.mxu0 0.0
      %433 = vmatpush1.msra.mxu0 0.0
      %434 = vmatprep.subr.mxu0 0.0
      %435 = vmatpush1.msra.mxu0 0.0
      %436 = vmatprep.subr.mxu0 0.0
      %437 = vmatpush1.msra.mxu0 0.0
      %438 = vmatprep.subr.mxu0 0.0
      %439 = vmatpush1.msra.mxu0 0.0
      %440 = vmatprep.subr.mxu0 0.0
      %441 = vmatpush1.msra.mxu0 0.0
      %442 = vmatprep.subr.mxu0 0.0
      %443 = vmatpush1.msra.mxu0 0.0
      %444 = vmatprep.subr.mxu0 0.0
      %445 = vmatpush1.msra.mxu0 0.0
      %446 = vmatprep.subr.mxu0 0.0
      %447 = vmatpush1.msra.mxu0 0.0
      %448 = vmatprep.subr.mxu0 0.0
      %449 = vmatpush1.msra.mxu0 0.0
      %450 = vmatprep.subr.mxu0 0.0
      %451 = vmatpush1.msra.mxu0 0.0
      %452 = vmatprep.subr.mxu0 0.0
      %453 = vmatpush1.msra.mxu0 0.0
      %454 = vmatprep.subr.mxu0 0.0
      %455 = vmatpush1.msra.mxu0 0.0
      %456 = vmatprep.subr.mxu0 0.0
      %457 = vmatpush1.msra.mxu0 0.0
      %458 = vmatprep.mubr.f32.mxu0 0.0
      %459 = vmatmul.mubr.f32.gmra.mrb[0].mxu0 %v392
      %v460 = vpop.f32.mrb[0].mxu0
      %v461 = vadd.f32 0.0, %v460
      %v462 = vpop.f32.mrb[0].mxu0
      %463 = vdwg.mxu0
      %v464 = vlaneseq
      %v465 = vshrl.u32 %v464, 7
      %v466 = vadd.s32 %v465, 8
      %v467 = vadd.s32 %v465, 16
      %v468 = vadd.s32 %v465, 24
      %v469 = vlaneseq
      %v470 = vand.u32 %v469, 127
      %v471 = vmul.u32 %v470, 8
      %vm472 = vcmp.ge.s32.totalorder %v465, %v471
      %vm473 = vcmp.ge.s32.totalorder %v466, %v471
      %vm474 = vcmp.ge.s32.totalorder %v467, %v471
      %vm475 = vcmp.ge.s32.totalorder %v468, %v471
      %v476 = vadd.s32 %v471, 8
      %vm477 = vcmp.lt.s32.totalorder %v465, %v476
      %vm478 = vcmp.lt.s32.totalorder %v466, %v476
      %vm479 = vcmp.lt.s32.totalorder %v467, %v476
      %vm480 = vcmp.lt.s32.totalorder %v468, %v476
      %vm481 = vmand %vm472, %vm477
      %vm482 = vmand %vm473, %vm478
      %vm483 = vmand %vm474, %vm479
      %vm484 = vmand %vm475, %vm480
      %v485 = vsel %vm481, 0.35355338, 0.0
      %v486 = vsel %vm482, 0.35355338, 0.0
      %v487 = vsel %vm483, 0.35355338, 0.0
      %v488 = vsel %vm484, 0.35355338, 0.0
      %v489 = vmul.u32 %v465, 8
      %vm490 = vcmp.ge.s32.totalorder %v470, %v489
      %v491 = vadd.s32 %v489, 8
      %vm492 = vcmp.lt.s32.totalorder %v470, %v491
      %vm493 = vmand %vm490, %vm492
      %v494 = vsel %vm493, 1.0, 0.0
      %v495 = vmul.f32 %v303, %v382
      %v497 = vsel %vm232, %v495, 0
      %499 = vmatprep.subr.mxu0 0.0
      %500 = vmatpush1.msra.mxu0 %v485
      %501 = vmatprep.subr.mxu0 0.0
      %502 = vmatpush1.msra.mxu0 %v486
      %503 = vmatprep.subr.mxu0 0.0
      %504 = vmatpush1.msra.mxu0 %v487
      %505 = vmatprep.subr.mxu0 0.0
      %506 = vmatpush1.msra.mxu0 %v488
      %507 = vmatprep.subr.mxu0 0.0
      %508 = vmatpush1.msra.mxu0 0.0
      %509 = vmatprep.subr.mxu0 0.0
      %510 = vmatpush1.msra.mxu0 0.0
      %511 = vmatprep.subr.mxu0 0.0
      %512 = vmatpush1.msra.mxu0 0.0
      %513 = vmatprep.subr.mxu0 0.0
      %514 = vmatpush1.msra.mxu0 0.0
      %515 = vmatprep.subr.mxu0 0.0
      %516 = vmatpush1.msra.mxu0 0.0
      %517 = vmatprep.subr.mxu0 0.0
      %518 = vmatpush1.msra.mxu0 0.0
      %519 = vmatprep.subr.mxu0 0.0
      %520 = vmatpush1.msra.mxu0 0.0
      %521 = vmatprep.subr.mxu0 0.0
      %522 = vmatpush1.msra.mxu0 0.0
      %523 = vmatprep.subr.mxu0 0.0
      %524 = vmatpush1.msra.mxu0 0.0
      %525 = vmatprep.subr.mxu0 0.0
      %526 = vmatpush1.msra.mxu0 0.0
      %527 = vmatprep.subr.mxu0 0.0
      %528 = vmatpush1.msra.mxu0 0.0
      %529 = vmatprep.subr.mxu0 0.0
      %530 = vmatpush1.msra.mxu0 0.0
      %531 = vmatprep.subr.mxu0 0.0
      %532 = vmatpush1.msra.mxu0 0.0
      %533 = vmatprep.subr.mxu0 0.0
      %534 = vmatpush1.msra.mxu0 0.0
      %535 = vmatprep.subr.mxu0 0.0
      %536 = vmatpush1.msra.mxu0 0.0
      %537 = vmatprep.subr.mxu0 0.0
      %538 = vmatpush1.msra.mxu0 0.0
      %539 = vmatprep.subr.mxu0 0.0
      %540 = vmatpush1.msra.mxu0 0.0
      %541 = vmatprep.subr.mxu0 0.0
      %542 = vmatpush1.msra.mxu0 0.0
      %543 = vmatprep.subr.mxu0 0.0
      %544 = vmatpush1.msra.mxu0 0.0
      %545 = vmatprep.subr.mxu0 0.0
      %546 = vmatpush1.msra.mxu0 0.0
      %547 = vmatprep.subr.mxu0 0.0
      %548 = vmatpush1.msra.mxu0 0.0
      %549 = vmatprep.subr.mxu0 0.0
      %550 = vmatpush1.msra.mxu0 0.0
      %551 = vmatprep.subr.mxu0 0.0
      %552 = vmatpush1.msra.mxu0 0.0
      %553 = vmatprep.subr.mxu0 0.0
      %554 = vmatpush1.msra.mxu0 0.0
      %555 = vmatprep.subr.mxu0 0.0
      %556 = vmatpush1.msra.mxu0 0.0
      %557 = vmatprep.subr.mxu0 0.0
      %558 = vmatpush1.msra.mxu0 0.0
      %559 = vmatprep.subr.mxu0 0.0
      %560 = vmatpush1.msra.mxu0 0.0
      %561 = vmatprep.subr.mxu0 0.0
      %562 = vmatpush1.msra.mxu0 0.0
      %563 = vmatprep.mubr.f32.mxu0 0.0
      %564 = vmatmul.mubr.f32.gmra.mrb[0].mxu0 %v497
      %v565 = vpop.f32.mrb[0].mxu0
      %v566 = vadd.f32 0.0, %v565
      %v567 = vpop.f32.mrb[0].mxu0
      %568 = vdwg.mxu0
      %570 = vrot.lane.b32.xlu0 %v382, 120
      %v571 = vpop.permute.xlu0 %570
      %573 = vrot.lane.b32.xlu0 %v382, 24
      %v574 = vpop.permute.xlu0 %573
      %vm576 = vcmask 195584
      %v577 = vsel %vm576, %v571, %v574
      %v578 = vmul.f32 %v303, %v577
      %v580 = vsel %vm232, %v578, 0
      %582 = vmatprep.subr.mxu0 0.0
      %583 = vmatpush1.msra.mxu0 %v485
      %584 = vmatprep.subr.mxu0 0.0
      %585 = vmatpush1.msra.mxu0 %v486
      %586 = vmatprep.subr.mxu0 0.0
      %587 = vmatpush1.msra.mxu0 %v487
      %588 = vmatprep.subr.mxu0 0.0
      %589 = vmatpush1.msra.mxu0 %v488
      %590 = vmatprep.subr.mxu0 0.0
      %591 = vmatpush1.msra.mxu0 0.0
      %592 = vmatprep.subr.mxu0 0.0
      %593 = vmatpush1.msra.mxu0 0.0
      %594 = vmatprep.subr.mxu0 0.0
      %595 = vmatpush1.msra.mxu0 0.0
      %596 = vmatprep.subr.mxu0 0.0
      %597 = vmatpush1.msra.mxu0 0.0
      %598 = vmatprep.subr.mxu0 0.0
      %599 = vmatpush1.msra.mxu0 0.0
      %600 = vmatprep.subr.mxu0 0.0
      %601 = vmatpush1.msra.mxu0 0.0
      %602 = vmatprep.subr.mxu0 0.0
      %603 = vmatpush1.msra.mxu0 0.0
      %604 = vmatprep.subr.mxu0 0.0
      %605 = vmatpush1.msra.mxu0 0.0
      %606 = vmatprep.subr.mxu0 0.0
      %607 = vmatpush1.msra.mxu0 0.0
      %608 = vmatprep.subr.mxu0 0.0
      %609 = vmatpush1.msra.mxu0 0.0
      %610 = vmatprep.subr.mxu0 0.0
      %611 = vmatpush1.msra.mxu0 0.0
      %612 = vmatprep.subr.mxu0 0.0
      %613 = vmatpush1.msra.mxu0 0.0
      %614 = vmatprep.subr.mxu0 0.0
      %615 = vmatpush1.msra.mxu0 0.0
      %616 = vmatprep.subr.mxu0 0.0
      %617 = vmatpush1.msra.mxu0 0.0
      %618 = vmatprep.subr.mxu0 0.0
      %619 = vmatpush1.msra.mxu0 0.0
      %620 = vmatprep.subr.mxu0 0.0
      %621 = vmatpush1.msra.mxu0 0.0
      %622 = vmatprep.subr.mxu0 0.0
      %623 = vmatpush1.msra.mxu0 0.0
      %624 = vmatprep.subr.mxu0 0.0
      %625 = vmatpush1.msra.mxu0 0.0
      %626 = vmatprep.subr.mxu0 0.0
      %627 = vmatpush1.msra.mxu0 0.0
      %628 = vmatprep.subr.mxu0 0.0
      %629 = vmatpush1.msra.mxu0 0.0
      %630 = vmatprep.subr.mxu0 0.0
      %631 = vmatpush1.msra.mxu0 0.0
      %632 = vmatprep.subr.mxu0 0.0
      %633 = vmatpush1.msra.mxu0 0.0
      %634 = vmatprep.subr.mxu0 0.0
      %635 = vmatpush1.msra.mxu0 0.0
      %636 = vmatprep.subr.mxu0 0.0
      %637 = vmatpush1.msra.mxu0 0.0
      %638 = vmatprep.subr.mxu0 0.0
      %639 = vmatpush1.msra.mxu0 0.0
      %640 = vmatprep.subr.mxu0 0.0
      %641 = vmatpush1.msra.mxu0 0.0
      %642 = vmatprep.subr.mxu0 0.0
      %643 = vmatpush1.msra.mxu0 0.0
      %644 = vmatprep.subr.mxu0 0.0
      %645 = vmatpush1.msra.mxu0 0.0
      %646 = vmatprep.mubr.f32.mxu0 0.0
      %647 = vmatmul.mubr.f32.gmra.mrb[0].mxu0 %v580
      %v648 = vpop.f32.mrb[0].mxu0
      %v649 = vadd.f32 0.0, %v648
      %v650 = vpop.f32.mrb[0].mxu0
      %651 = vdwg.mxu0
      %652 = vrot.lane.b32.xlu0 %v382, 112
      %v653 = vpop.permute.xlu0 %652
      %655 = vrot.lane.b32.xlu0 %v382, 16
      %v656 = vpop.permute.xlu0 %655
      %vm658 = vcmask 130048
      %v659 = vsel %vm658, %v653, %v656
      %v660 = vmul.f32 %v303, %v659
      %v662 = vsel %vm232, %v660, 0
      %664 = vmatprep.subr.mxu0 0.0
      %665 = vmatpush1.msra.mxu0 %v485
      %666 = vmatprep.subr.mxu0 0.0
      %667 = vmatpush1.msra.mxu0 %v486
      %668 = vmatprep.subr.mxu0 0.0
      %669 = vmatpush1.msra.mxu0 %v487
      %670 = vmatprep.subr.mxu0 0.0
      %671 = vmatpush1.msra.mxu0 %v488
      %672 = vmatprep.subr.mxu0 0.0
      %673 = vmatpush1.msra.mxu0 0.0
      %674 = vmatprep.subr.mxu0 0.0
      %675 = vmatpush1.msra.mxu0 0.0
      %676 = vmatprep.subr.mxu0 0.0
      %677 = vmatpush1.msra.mxu0 0.0
      %678 = vmatprep.subr.mxu0 0.0
      %679 = vmatpush1.msra.mxu0 0.0
      %680 = vmatprep.subr.mxu0 0.0
      %681 = vmatpush1.msra.mxu0 0.0
      %682 = vmatprep.subr.mxu0 0.0
      %683 = vmatpush1.msra.mxu0 0.0
      %684 = vmatprep.subr.mxu0 0.0
      %685 = vmatpush1.msra.mxu0 0.0
      %686 = vmatprep.subr.mxu0 0.0
      %687 = vmatpush1.msra.mxu0 0.0
      %688 = vmatprep.subr.mxu0 0.0
      %689 = vmatpush1.msra.mxu0 0.0
      %690 = vmatprep.subr.mxu0 0.0
      %691 = vmatpush1.msra.mxu0 0.0
      %692 = vmatprep.subr.mxu0 0.0
      %693 = vmatpush1.msra.mxu0 0.0
      %694 = vmatprep.subr.mxu0 0.0
      %695 = vmatpush1.msra.mxu0 0.0
      %696 = vmatprep.subr.mxu0 0.0
      %697 = vmatpush1.msra.mxu0 0.0
      %698 = vmatprep.subr.mxu0 0.0
      %699 = vmatpush1.msra.mxu0 0.0
      %700 = vmatprep.subr.mxu0 0.0
      %701 = vmatpush1.msra.mxu0 0.0
      %702 = vmatprep.subr.mxu0 0.0
      %703 = vmatpush1.msra.mxu0 0.0
      %704 = vmatprep.subr.mxu0 0.0
      %705 = vmatpush1.msra.mxu0 0.0
      %706 = vmatprep.subr.mxu0 0.0
      %707 = vmatpush1.msra.mxu0 0.0
      %708 = vmatprep.subr.mxu0 0.0
      %709 = vmatpush1.msra.mxu0 0.0
      %710 = vmatprep.subr.mxu0 0.0
      %711 = vmatpush1.msra.mxu0 0.0
      %712 = vmatprep.subr.mxu0 0.0
      %713 = vmatpush1.msra.mxu0 0.0
      %714 = vmatprep.subr.mxu0 0.0
      %715 = vmatpush1.msra.mxu0 0.0
      %716 = vmatprep.subr.mxu0 0.0
      %717 = vmatpush1.msra.mxu0 0.0
      %718 = vmatprep.subr.mxu0 0.0
      %719 = vmatpush1.msra.mxu0 0.0
      %720 = vmatprep.subr.mxu0 0.0
      %721 = vmatpush1.msra.mxu0 0.0
      %722 = vmatprep.subr.mxu0 0.0
      %723 = vmatpush1.msra.mxu0 0.0
      %724 = vmatprep.subr.mxu0 0.0
      %725 = vmatpush1.msra.mxu0 0.0
      %726 = vmatprep.subr.mxu0 0.0
      %727 = vmatpush1.msra.mxu0 0.0
      %728 = vmatprep.mubr.f32.mxu0 0.0
      %729 = vmatmul.mubr.f32.gmra.mrb[0].mxu0 %v662
      %v730 = vpop.f32.mrb[0].mxu0
      %v731 = vadd.f32 0.0, %v730
      %v732 = vpop.f32.mrb[0].mxu0
      %733 = vdwg.mxu0
      %734 = vrot.lane.b32.xlu0 %v382, 104
      %v735 = vpop.permute.xlu0 %734
      %737 = vrot.lane.b32.xlu0 %v382, 8
      %v738 = vpop.permute.xlu0 %737
      %vm740 = vcmask 64512
      %v741 = vsel %vm740, %v735, %v738
      %v742 = vmul.f32 %v303, %v741
      %v744 = vsel %vm232, %v742, 0
      %746 = vmatprep.subr.mxu0 0.0
      %747 = vmatpush1.msra.mxu0 %v485
      %748 = vmatprep.subr.mxu0 0.0
      %749 = vmatpush1.msra.mxu0 %v486
      %750 = vmatprep.subr.mxu0 0.0
      %751 = vmatpush1.msra.mxu0 %v487
      %752 = vmatprep.subr.mxu0 0.0
      %753 = vmatpush1.msra.mxu0 %v488
      %754 = vmatprep.subr.mxu0 0.0
      %755 = vmatpush1.msra.mxu0 0.0
      %756 = vmatprep.subr.mxu0 0.0
      %757 = vmatpush1.msra.mxu0 0.0
      %758 = vmatprep.subr.mxu0 0.0
      %759 = vmatpush1.msra.mxu0 0.0
      %760 = vmatprep.subr.mxu0 0.0
      %761 = vmatpush1.msra.mxu0 0.0
      %762 = vmatprep.subr.mxu0 0.0
      %763 = vmatpush1.msra.mxu0 0.0
      %764 = vmatprep.subr.mxu0 0.0
      %765 = vmatpush1.msra.mxu0 0.0
      %766 = vmatprep.subr.mxu0 0.0
      %767 = vmatpush1.msra.mxu0 0.0
      %768 = vmatprep.subr.mxu0 0.0
      %769 = vmatpush1.msra.mxu0 0.0
      %770 = vmatprep.subr.mxu0 0.0
      %771 = vmatpush1.msra.mxu0 0.0
      %772 = vmatprep.subr.mxu0 0.0
      %773 = vmatpush1.msra.mxu0 0.0
      %774 = vmatprep.subr.mxu0 0.0
      %775 = vmatpush1.msra.mxu0 0.0
      %776 = vmatprep.subr.mxu0 0.0
      %777 = vmatpush1.msra.mxu0 0.0
      %778 = vmatprep.subr.mxu0 0.0
      %779 = vmatpush1.msra.mxu0 0.0
      %780 = vmatprep.subr.mxu0 0.0
      %781 = vmatpush1.msra.mxu0 0.0
      %782 = vmatprep.subr.mxu0 0.0
      %783 = vmatpush1.msra.mxu0 0.0
      %784 = vmatprep.subr.mxu0 0.0
      %785 = vmatpush1.msra.mxu0 0.0
      %786 = vmatprep.subr.mxu0 0.0
      %787 = vmatpush1.msra.mxu0 0.0
      %788 = vmatprep.subr.mxu0 0.0
      %789 = vmatpush1.msra.mxu0 0.0
      %790 = vmatprep.subr.mxu0 0.0
      %791 = vmatpush1.msra.mxu0 0.0
      %792 = vmatprep.subr.mxu0 0.0
      %793 = vmatpush1.msra.mxu0 0.0
      %794 = vmatprep.subr.mxu0 0.0
      %795 = vmatpush1.msra.mxu0 0.0
      %796 = vmatprep.subr.mxu0 0.0
      %797 = vmatpush1.msra.mxu0 0.0
      %798 = vmatprep.subr.mxu0 0.0
      %799 = vmatpush1.msra.mxu0 0.0
      %800 = vmatprep.subr.mxu0 0.0
      %801 = vmatpush1.msra.mxu0 0.0
      %802 = vmatprep.subr.mxu0 0.0
      %803 = vmatpush1.msra.mxu0 0.0
      %804 = vmatprep.subr.mxu0 0.0
      %805 = vmatpush1.msra.mxu0 0.0
      %806 = vmatprep.subr.mxu0 0.0
      %807 = vmatpush1.msra.mxu0 0.0
      %808 = vmatprep.subr.mxu0 0.0
      %809 = vmatpush1.msra.mxu0 0.0
      %810 = vmatprep.mubr.f32.mxu0 0.0
      %811 = vmatmul.mubr.f32.gmra.mrb[0].mxu0 %v744
      %v812 = vpop.f32.mrb[0].mxu0
      %v813 = vadd.f32 0.0, %v812
      %v814 = vpop.f32.mrb[0].mxu0
      %815 = vdwg.mxu0
      %v816 = vmax.f32 %v566, %v649
      %v817 = vmax.f32 %v816, %v731
      %v818 = vmax.f32 %v817, %v813
      %v819 = vsub.f32 %v566, %v818
      %v820 = vmul.f32 %v819, 1.442695
      %v821 = vpow.pop %v820
      %v822 = vsub.f32 %v649, %v818
      %v823 = vmul.f32 %v822, 1.442695
      %v824 = vpow.pop %v823
      %v825 = vsub.f32 %v731, %v818
      %v826 = vmul.f32 %v825, 1.442695
      %v827 = vpow.pop %v826
      %v828 = vsub.f32 %v813, %v818
      %v829 = vmul.f32 %v828, 1.442695
      %v830 = vpow.pop %v829
      %v831 = vadd.f32 %v821, %v824
      %v832 = vadd.f32 %v831, %v827
      %v833 = vadd.f32 %v832, %v830
      %v834 = vrcp.pop %v833
      %v835 = vmul.f32 %v833, %v834
      %v836 = vsub.f32 2.0, %v835
      %v837 = vmul.f32 %v834, %v836
      %v838 = vmul.f32 %v821, %v837
      %v840 = vsel %vm740, %v838, 0
      %842 = vmatprep.subr.mxu0 0.0
      %843 = vmatpush1.msra.mxu0 %v494
      %844 = vmatprep.subr.mxu0 0.0
      %845 = vmatpush1.msra.mxu0 0.0
      %846 = vmatprep.subr.mxu0 0.0
      %847 = vmatpush1.msra.mxu0 0.0
      %848 = vmatprep.subr.mxu0 0.0
      %849 = vmatpush1.msra.mxu0 0.0
      %850 = vmatprep.subr.mxu0 0.0
      %851 = vmatpush1.msra.mxu0 0.0
      %852 = vmatprep.subr.mxu0 0.0
      %853 = vmatpush1.msra.mxu0 0.0
      %854 = vmatprep.subr.mxu0 0.0
      %855 = vmatpush1.msra.mxu0 0.0
      %856 = vmatprep.subr.mxu0 0.0
      %857 = vmatpush1.msra.mxu0 0.0
      %858 = vmatprep.subr.mxu0 0.0
      %859 = vmatpush1.msra.mxu0 0.0
      %860 = vmatprep.subr.mxu0 0.0
      %861 = vmatpush1.msra.mxu0 0.0
      %862 = vmatprep.subr.mxu0 0.0
      %863 = vmatpush1.msra.mxu0 0.0
      %864 = vmatprep.subr.mxu0 0.0
      %865 = vmatpush1.msra.mxu0 0.0
      %866 = vmatprep.subr.mxu0 0.0
      %867 = vmatpush1.msra.mxu0 0.0
      %868 = vmatprep.subr.mxu0 0.0
      %869 = vmatpush1.msra.mxu0 0.0
      %870 = vmatprep.subr.mxu0 0.0
      %871 = vmatpush1.msra.mxu0 0.0
      %872 = vmatprep.subr.mxu0 0.0
      %873 = vmatpush1.msra.mxu0 0.0
      %874 = vmatprep.subr.mxu0 0.0
      %875 = vmatpush1.msra.mxu0 0.0
      %876 = vmatprep.subr.mxu0 0.0
      %877 = vmatpush1.msra.mxu0 0.0
      %878 = vmatprep.subr.mxu0 0.0
      %879 = vmatpush1.msra.mxu0 0.0
      %880 = vmatprep.subr.mxu0 0.0
      %881 = vmatpush1.msra.mxu0 0.0
      %882 = vmatprep.subr.mxu0 0.0
      %883 = vmatpush1.msra.mxu0 0.0
      %884 = vmatprep.subr.mxu0 0.0
      %885 = vmatpush1.msra.mxu0 0.0
      %886 = vmatprep.subr.mxu0 0.0
      %887 = vmatpush1.msra.mxu0 0.0
      %888 = vmatprep.subr.mxu0 0.0
      %889 = vmatpush1.msra.mxu0 0.0
      %890 = vmatprep.subr.mxu0 0.0
      %891 = vmatpush1.msra.mxu0 0.0
      %892 = vmatprep.subr.mxu0 0.0
      %893 = vmatpush1.msra.mxu0 0.0
      %894 = vmatprep.subr.mxu0 0.0
      %895 = vmatpush1.msra.mxu0 0.0
      %896 = vmatprep.subr.mxu0 0.0
      %897 = vmatpush1.msra.mxu0 0.0
      %898 = vmatprep.subr.mxu0 0.0
      %899 = vmatpush1.msra.mxu0 0.0
      %900 = vmatprep.subr.mxu0 0.0
      %901 = vmatpush1.msra.mxu0 0.0
      %902 = vmatprep.subr.mxu0 0.0
      %903 = vmatpush1.msra.mxu0 0.0
      %904 = vmatprep.subr.mxu0 0.0
      %905 = vmatpush1.msra.mxu0 0.0
      %906 = vmatprep.mubr.f32.mxu0 0.0
      %907 = vmatmul.mubr.f32.gmra.mrb[0].mxu0 %v840
      %v908 = vpop.f32.mrb[0].mxu0
      %v909 = vadd.f32 0.0, %v908
      %v910 = vpop.f32.mrb[0].mxu0
      %911 = vdwg.mxu0
      %v912 = vmul.f32 %v909, %v461
      %v913 = vadd.f32 %v912, 0.0
      %v914 = vmul.f32 %v824, %v837
      %v916 = vsel %vm740, %v914, 0
      %918 = vmatprep.subr.mxu0 0.0
      %919 = vmatpush1.msra.mxu0 %v494
      %920 = vmatprep.subr.mxu0 0.0
      %921 = vmatpush1.msra.mxu0 0.0
      %922 = vmatprep.subr.mxu0 0.0
      %923 = vmatpush1.msra.mxu0 0.0
      %924 = vmatprep.subr.mxu0 0.0
      %925 = vmatpush1.msra.mxu0 0.0
      %926 = vmatprep.subr.mxu0 0.0
      %927 = vmatpush1.msra.mxu0 0.0
      %928 = vmatprep.subr.mxu0 0.0
      %929 = vmatpush1.msra.mxu0 0.0
      %930 = vmatprep.subr.mxu0 0.0
      %931 = vmatpush1.msra.mxu0 0.0
      %932 = vmatprep.subr.mxu0 0.0
      %933 = vmatpush1.msra.mxu0 0.0
      %934 = vmatprep.subr.mxu0 0.0
      %935 = vmatpush1.msra.mxu0 0.0
      %936 = vmatprep.subr.mxu0 0.0
      %937 = vmatpush1.msra.mxu0 0.0
      %938 = vmatprep.subr.mxu0 0.0
      %939 = vmatpush1.msra.mxu0 0.0
      %940 = vmatprep.subr.mxu0 0.0
      %941 = vmatpush1.msra.mxu0 0.0
      %942 = vmatprep.subr.mxu0 0.0
      %943 = vmatpush1.msra.mxu0 0.0
      %944 = vmatprep.subr.mxu0 0.0
      %945 = vmatpush1.msra.mxu0 0.0
      %946 = vmatprep.subr.mxu0 0.0
      %947 = vmatpush1.msra.mxu0 0.0
      %948 = vmatprep.subr.mxu0 0.0
      %949 = vmatpush1.msra.mxu0 0.0
      %950 = vmatprep.subr.mxu0 0.0
      %951 = vmatpush1.msra.mxu0 0.0
      %952 = vmatprep.subr.mxu0 0.0
      %953 = vmatpush1.msra.mxu0 0.0
      %954 = vmatprep.subr.mxu0 0.0
      %955 = vmatpush1.msra.mxu0 0.0
      %956 = vmatprep.subr.mxu0 0.0
      %957 = vmatpush1.msra.mxu0 0.0
      %958 = vmatprep.subr.mxu0 0.0
      %959 = vmatpush1.msra.mxu0 0.0
      %960 = vmatprep.subr.mxu0 0.0
      %961 = vmatpush1.msra.mxu0 0.0
      %962 = vmatprep.subr.mxu0 0.0
      %963 = vmatpush1.msra.mxu0 0.0
      %964 = vmatprep.subr.mxu0 0.0
      %965 = vmatpush1.msra.mxu0 0.0
      %966 = vmatprep.subr.mxu0 0.0
      %967 = vmatpush1.msra.mxu0 0.0
      %968 = vmatprep.subr.mxu0 0.0
      %969 = vmatpush1.msra.mxu0 0.0
      %970 = vmatprep.subr.mxu0 0.0
      %971 = vmatpush1.msra.mxu0 0.0
      %972 = vmatprep.subr.mxu0 0.0
      %973 = vmatpush1.msra.mxu0 0.0
      %974 = vmatprep.subr.mxu0 0.0
      %975 = vmatpush1.msra.mxu0 0.0
      %976 = vmatprep.subr.mxu0 0.0
      %977 = vmatpush1.msra.mxu0 0.0
      %978 = vmatprep.subr.mxu0 0.0
      %979 = vmatpush1.msra.mxu0 0.0
      %980 = vmatprep.subr.mxu0 0.0
      %981 = vmatpush1.msra.mxu0 0.0
      %982 = vmatprep.mubr.f32.mxu0 0.0
      %983 = vmatmul.mubr.f32.gmra.mrb[0].mxu0 %v916
      %v984 = vpop.f32.mrb[0].mxu0
      %v985 = vadd.f32 0.0, %v984
      %v986 = vpop.f32.mrb[0].mxu0
      %987 = vdwg.mxu0
      %989 = vrot.lane.b32.xlu0 %v461, 120
      %v990 = vpop.permute.xlu0 %989
      %992 = vrot.lane.b32.xlu0 %v461, 24
      %v993 = vpop.permute.xlu0 %992
      %v995 = vsel %vm576, %v990, %v993
      %v996 = vmul.f32 %v985, %v995
      %v997 = vadd.f32 %v913, %v996
      %v998 = vmul.f32 %v827, %v837
      %v1000 = vsel %vm740, %v998, 0
      %1002 = vmatprep.subr.mxu0 0.0
      %1003 = vmatpush1.msra.mxu0 %v494
      %1004 = vmatprep.subr.mxu0 0.0
      %1005 = vmatpush1.msra.mxu0 0.0
      %1006 = vmatprep.subr.mxu0 0.0
      %1007 = vmatpush1.msra.mxu0 0.0
      %1008 = vmatprep.subr.mxu0 0.0
      %1009 = vmatpush1.msra.mxu0 0.0
      %1010 = vmatprep.subr.mxu0 0.0
      %1011 = vmatpush1.msra.mxu0 0.0
      %1012 = vmatprep.subr.mxu0 0.0
      %1013 = vmatpush1.msra.mxu0 0.0
      %1014 = vmatprep.subr.mxu0 0.0
      %1015 = vmatpush1.msra.mxu0 0.0
      %1016 = vmatprep.subr.mxu0 0.0
      %1017 = vmatpush1.msra.mxu0 0.0
      %1018 = vmatprep.subr.mxu0 0.0
      %1019 = vmatpush1.msra.mxu0 0.0
      %1020 = vmatprep.subr.mxu0 0.0
      %1021 = vmatpush1.msra.mxu0 0.0
      %1022 = vmatprep.subr.mxu0 0.0
      %1023 = vmatpush1.msra.mxu0 0.0
      %1024 = vmatprep.subr.mxu0 0.0
      %1025 = vmatpush1.msra.mxu0 0.0
      %1026 = vmatprep.subr.mxu0 0.0
      %1027 = vmatpush1.msra.mxu0 0.0
      %1028 = vmatprep.subr.mxu0 0.0
      %1029 = vmatpush1.msra.mxu0 0.0
      %1030 = vmatprep.subr.mxu0 0.0
      %1031 = vmatpush1.msra.mxu0 0.0
      %1032 = vmatprep.subr.mxu0 0.0
      %1033 = vmatpush1.msra.mxu0 0.0
      %1034 = vmatprep.subr.mxu0 0.0
      %1035 = vmatpush1.msra.mxu0 0.0
      %1036 = vmatprep.subr.mxu0 0.0
      %1037 = vmatpush1.msra.mxu0 0.0
      %1038 = vmatprep.subr.mxu0 0.0
      %1039 = vmatpush1.msra.mxu0 0.0
      %1040 = vmatprep.subr.mxu0 0.0
      %1041 = vmatpush1.msra.mxu0 0.0
      %1042 = vmatprep.subr.mxu0 0.0
      %1043 = vmatpush1.msra.mxu0 0.0
      %1044 = vmatprep.subr.mxu0 0.0
      %1045 = vmatpush1.msra.mxu0 0.0
      %1046 = vmatprep.subr.mxu0 0.0
      %1047 = vmatpush1.msra.mxu0 0.0
      %1048 = vmatprep.subr.mxu0 0.0
      %1049 = vmatpush1.msra.mxu0 0.0
      %1050 = vmatprep.subr.mxu0 0.0
      %1051 = vmatpush1.msra.mxu0 0.0
      %1052 = vmatprep.subr.mxu0 0.0
      %1053 = vmatpush1.msra.mxu0 0.0
      %1054 = vmatprep.subr.mxu0 0.0
      %1055 = vmatpush1.msra.mxu0 0.0
      %1056 = vmatprep.subr.mxu0 0.0
      %1057 = vmatpush1.msra.mxu0 0.0
      %1058 = vmatprep.subr.mxu0 0.0
      %1059 = vmatpush1.msra.mxu0 0.0
      %1060 = vmatprep.subr.mxu0 0.0
      %1061 = vmatpush1.msra.mxu0 0.0
      %1062 = vmatprep.subr.mxu0 0.0
      %1063 = vmatpush1.msra.mxu0 0.0
      %1064 = vmatprep.subr.mxu0 0.0
      %1065 = vmatpush1.msra.mxu0 0.0
      %1066 = vmatprep.mubr.f32.mxu0 0.0
      %1067 = vmatmul.mubr.f32.gmra.mrb[0].mxu0 %v1000
      %v1068 = vpop.f32.mrb[0].mxu0
      %v1069 = vadd.f32 0.0, %v1068
      %v1070 = vpop.f32.mrb[0].mxu0
      %1071 = vdwg.mxu0
      %1072 = vrot.lane.b32.xlu0 %v461, 112
      %v1073 = vpop.permute.xlu0 %1072
      %1075 = vrot.lane.b32.xlu0 %v461, 16
      %v1076 = vpop.permute.xlu0 %1075
      %v1078 = vsel %vm658, %v1073, %v1076
      %v1079 = vmul.f32 %v1069, %v1078
      %v1080 = vadd.f32 %v997, %v1079
      %v1081 = vmul.f32 %v830, %v837
      %v1083 = vsel %vm740, %v1081, 0
      %1085 = vmatprep.subr.mxu0 0.0
      %1086 = vmatpush1.msra.mxu0 %v494
      %1087 = vmatprep.subr.mxu0 0.0
      %1088 = vmatpush1.msra.mxu0 0.0
      %1089 = vmatprep.subr.mxu0 0.0
      %1090 = vmatpush1.msra.mxu0 0.0
      %1091 = vmatprep.subr.mxu0 0.0
      %1092 = vmatpush1.msra.mxu0 0.0
      %1093 = vmatprep.subr.mxu0 0.0
      %1094 = vmatpush1.msra.mxu0 0.0
      %1095 = vmatprep.subr.mxu0 0.0
      %1096 = vmatpush1.msra.mxu0 0.0
      %1097 = vmatprep.subr.mxu0 0.0
      %1098 = vmatpush1.msra.mxu0 0.0
      %1099 = vmatprep.subr.mxu0 0.0
      %1100 = vmatpush1.msra.mxu0 0.0
      %1101 = vmatprep.subr.mxu0 0.0
      %1102 = vmatpush1.msra.mxu0 0.0
      %1103 = vmatprep.subr.mxu0 0.0
      %1104 = vmatpush1.msra.mxu0 0.0
      %1105 = vmatprep.subr.mxu0 0.0
      %1106 = vmatpush1.msra.mxu0 0.0
      %1107 = vmatprep.subr.mxu0 0.0
      %1108 = vmatpush1.msra.mxu0 0.0
      %1109 = vmatprep.subr.mxu0 0.0
      %1110 = vmatpush1.msra.mxu0 0.0
      %1111 = vmatprep.subr.mxu0 0.0
      %1112 = vmatpush1.msra.mxu0 0.0
      %1113 = vmatprep.subr.mxu0 0.0
      %1114 = vmatpush1.msra.mxu0 0.0
      %1115 = vmatprep.subr.mxu0 0.0
      %1116 = vmatpush1.msra.mxu0 0.0
      %1117 = vmatprep.subr.mxu0 0.0
      %1118 = vmatpush1.msra.mxu0 0.0
      %1119 = vmatprep.subr.mxu0 0.0
      %1120 = vmatpush1.msra.mxu0 0.0
      %1121 = vmatprep.subr.mxu0 0.0
      %1122 = vmatpush1.msra.mxu0 0.0
      %1123 = vmatprep.subr.mxu0 0.0
      %1124 = vmatpush1.msra.mxu0 0.0
      %1125 = vmatprep.subr.mxu0 0.0
      %1126 = vmatpush1.msra.mxu0 0.0
      %1127 = vmatprep.subr.mxu0 0.0
      %1128 = vmatpush1.msra.mxu0 0.0
      %1129 = vmatprep.subr.mxu0 0.0
      %1130 = vmatpush1.msra.mxu0 0.0
      %1131 = vmatprep.subr.mxu0 0.0
      %1132 = vmatpush1.msra.mxu0 0.0
      %1133 = vmatprep.subr.mxu0 0.0
      %1134 = vmatpush1.msra.mxu0 0.0
      %1135 = vmatprep.subr.mxu0 0.0
      %1136 = vmatpush1.msra.mxu0 0.0
      %1137 = vmatprep.subr.mxu0 0.0
      %1138 = vmatpush1.msra.mxu0 0.0
      %1139 = vmatprep.subr.mxu0 0.0
      %1140 = vmatpush1.msra.mxu0 0.0
      %1141 = vmatprep.subr.mxu0 0.0
      %1142 = vmatpush1.msra.mxu0 0.0
      %1143 = vmatprep.subr.mxu0 0.0
      %1144 = vmatpush1.msra.mxu0 0.0
      %1145 = vmatprep.subr.mxu0 0.0
      %1146 = vmatpush1.msra.mxu0 0.0
      %1147 = vmatprep.subr.mxu0 0.0
      %1148 = vmatpush1.msra.mxu0 0.0
      %1149 = vmatprep.mubr.f32.mxu0 0.0
      %1150 = vmatmul.mubr.f32.gmra.mrb[0].mxu0 %v1083
      %v1151 = vpop.f32.mrb[0].mxu0
      %v1152 = vadd.f32 0.0, %v1151
      %v1153 = vpop.f32.mrb[0].mxu0
      %1154 = vdwg.mxu0
      %1155 = vrot.lane.b32.xlu0 %v461, 104
      %v1156 = vpop.permute.xlu0 %1155
      %1158 = vrot.lane.b32.xlu0 %v461, 8
      %v1159 = vpop.permute.xlu0 %1158
      %v1161 = vsel %vm740, %v1156, %v1159
      %v1162 = vmul.f32 %v1152, %v1161
      %v1163 = vadd.f32 %v1080, %v1162
      %1164 = vst.msk [vmem:[%s226] sm:$0xff] %vm232, %v1163
      %p1165 = scmp.lt.s32.totalorder %s15, 1
      %s1166 = scalar_select %p1165, %s15, 1
      %s1167 = smul.addr %s1166, 8
      %s1168 = scalar_lea.vmem %s4, %s1167
      // Predicated region
      $region37: #{seq_att.1} parent=35 // pred_check
        %p1169 = pneg %p132
      $region38: #{seq_att.1} parent=35 // pred_check_branch
        %1171 = sbr.rel (%p1169) target = $region40
      $region39: #{seq_att.1} parent=35 // pred_region
        _
      $region40: #{seq_att.1} parent=35 // pred_fallthru
        _
    $region36: #{seq_att.1} parent=5 // pred_fallthru
      _
    %p1172 = scmp.le.s32.totalorder 2, %s10
    // Predicated region
    $region41: #{seq_att.1} parent=5 // pred_check
      %p1173 = pneg %p1172
    $region42: #{seq_att.1} parent=5 // pred_check_branch
      %1175 = sbr.rel (%p1173) target = $region44
    $region43: #{seq_att.1} parent=5 // pred_region
      %s1176 = ssub.s32 %s10, 2
      // Predicated region
      $region45: #{seq_att.1} parent=43 // pred_check
        %p1177 = pneg %p138
      $region46: #{seq_att.1} parent=43 // pred_check_branch
        %1179 = sbr.rel (%p1177) target = $region48
      $region47: #{seq_att.1} parent=43 // pred_region
        %p1180 = scmp.lt.s32.totalorder %s16, 1
        %s1181 = scalar_select %p1180, %s16, 1
        %s1182 = smul.addr %s1181, 8
        %s1183 = scalar_lea.vmem %s4, %s1182
      $region48: #{seq_att.1} parent=43 // pred_fallthru
        _
    $region44: #{seq_att.1} parent=5 // pred_fallthru
      _
  $region6: #{seq_att.1} parent=0 // loop_footer
    %s14 = sadd.s32 1, %s10
  $region7: #{seq_att.1} parent=0 // loop_footer_branch
    %9 = sbr.rel target = $region3
  $region8: #{seq_att.1} parent=0 // loop_exit
    _

</llo_original>
